<compile_context>
chip_gen: v5e
topology: v5e:2x2
jax: 0.10.0
libtpu: 0.0.40
codegen_flags: <defaults>
</compile_context>

<pallas_src>
import functools

import jax
import jax.numpy as jnp
from jax.experimental import pallas as pl
from jax.experimental.pallas import tpu as pltpu


# ---------------------------------------------------------------------------
# Kernel
# ---------------------------------------------------------------------------
def _rmsnorm_kernel(x_ref, w_ref, o_ref, *, eps: float, chunk_rows: int,
                    inv_dim: float):
    # x_ref / o_ref: (row_tile, dim) block; w_ref: (1, dim), grid-resident.
    # Hoist (1 + weight) out of the chunk loop (JAX does not CSE broadcasts).
    scale = 1.0 + w_ref[...].astype(jnp.float32)          # (1, dim)
    n_chunks = x_ref.shape[0] // chunk_rows                # static Python int

    @pl.loop(0, n_chunks)
    def _(c):
        r0 = pl.multiple_of(c * chunk_rows, chunk_rows)
        x = x_ref[pl.ds(r0, chunk_rows), :].astype(jnp.float32)
        # mean of squares = sum * (1/dim): multiply instead of divide.
        ms = jnp.sum(x * x, axis=-1, keepdims=True) * inv_dim
        inv = jax.lax.rsqrt(ms + eps)
        o_ref[pl.ds(r0, chunk_rows), :] = ((x * inv) * scale).astype(o_ref.dtype)


# ---------------------------------------------------------------------------
# Tiling / VMEM sizing
# ---------------------------------------------------------------------------
def _vmem_limit_bytes() -> int:
    """Generation-aware scoped-VMEM limit (~75% of physical, <= 96 MiB)."""
    try:
        info = pltpu.get_tpu_info()
        phys = getattr(info, "vmem_capacity_bytes", None)
        if phys:
            return int(min((phys * 3) // 4, 96 << 20))
    except Exception:
        pass
    # Conservative fallback: safe on v7x (64 MiB/TC physical) and well above
    # v5e's 16 MiB default scoped limit.
    return 48 << 20


def _pick_tiling(rows: int, dim: int, itemsize: int,
                 vmem_limit_bytes: int) -> tuple[int, int]:
    """Returns (row_tile, chunk_rows).

    row_tile sized by a per-step byte target (amortize ~0.35us grid-step
    overhead) and capped by a VMEM budget; chunk_rows bounds the in-kernel
    f32 temporaries. row_tile is always a multiple of chunk_rows.
    """
    sublane = max(8, 32 // max(itemsize, 1))     # f32:8, bf16:16, int8/fp8:32
    if rows <= sublane:
        return rows, rows                        # single full-extent block
    chunk = 128                                  # multiple of 32 -> all packings
    target_block_bytes = 4 << 20                 # >= ~4 MiB of input per step
    budget = (vmem_limit_bytes * 7) // 10        # slack for compiler temps
    fixed_temps = 4 * chunk * dim * 4            # f32 chunk temps in the loop
    per_row = 4 * itemsize * dim                 # double-buffered in + out blocks
    rows_by_bytes = max(1, target_block_bytes // (dim * itemsize))
    rows_by_vmem = max(1, (budget - fixed_temps) // per_row)
    row_tile = min(rows_by_bytes, rows_by_vmem)
    # Never make the block larger than the array in the row dimension.
    rows_floor = (rows // sublane) * sublane
    row_tile = min(row_tile, rows_floor)
    if row_tile >= chunk:
        row_tile = (row_tile // chunk) * chunk   # inner loop covers block exactly
    else:
        row_tile = max(sublane, (row_tile // sublane) * sublane)
        chunk = row_tile
    return row_tile, chunk


# ---------------------------------------------------------------------------
# Wrapper
# ---------------------------------------------------------------------------
def gemma_rmsnorm(x: jax.Array, weight: jax.Array, eps: float = 1e-6,
                  row_tile: int | None = None,
                  chunk_rows: int | None = None) -> jax.Array:
    """Pallas GemmaRMSNorm. x: (..., dim); weight: (dim,)."""
    orig_shape = x.shape
    dim = orig_shape[-1]
    rows = 1
    for s in orig_shape[:-1]:
        rows *= s
    x2d = x.reshape(rows, dim)
    w2d = weight.reshape(1, dim)

    vmem_limit = _vmem_limit_bytes()
    auto_tile, auto_chunk = _pick_tiling(rows, dim, jnp.dtype(x.dtype).itemsize,
                                         vmem_limit)
    if row_tile is None:
        row_tile = auto_tile
    if chunk_rows is None:
        chunk_rows = auto_chunk if row_tile == auto_tile else row_tile
    assert row_tile % chunk_rows == 0

    # No wrapper-side padding: ragged last block is handled by Pallas's
    # clipped/masked boundary block (per-row reduction -> no contamination).
    grid = pl.cdiv(rows, row_tile)

    out2d = pl.pallas_call(
        functools.partial(_rmsnorm_kernel, eps=eps, chunk_rows=chunk_rows,
                          inv_dim=1.0 / dim),
        out_shape=jax.ShapeDtypeStruct((rows, dim), x.dtype),
        grid_spec=pltpu.PrefetchScalarGridSpec(
            num_scalar_prefetch=0,
            grid=(grid,),
            in_specs=[
                pl.BlockSpec((row_tile, dim), lambda i: (i, 0)),
                pl.BlockSpec((1, dim), lambda i: (0, 0)),   # weight, resident
            ],
            out_specs=pl.BlockSpec((row_tile, dim), lambda i: (i, 0)),
        ),
        compiler_params=pltpu.CompilerParams(
            dimension_semantics=("parallel",),
            vmem_limit_bytes=vmem_limit,
        ),
    )(x2d, w2d)

    return out2d.reshape(orig_shape)


# ---------------------------------------------------------------------------
# Reference + smoke test
# ---------------------------------------------------------------------------
def _reference(x, weight, eps=1e-6):
    xf = x.astype(jnp.float32)
    norm = xf * jax.lax.rsqrt(jnp.mean(xf * xf, axis=-1, keepdims=True) + eps)
    out = norm * (1.0 + weight.astype(jnp.float32))
    return out.astype(x.dtype)


if __name__ == "__main__":
    # Small but representative shapes: hidden is a multiple of 128 so the
    # output is lane-dense.
    batch, seq, hidden = 2, 8, 256
    key = jax.random.PRNGKey(0)
    kx, kw = jax.random.split(key)

    # bf16 input exercises the float()-then-type_as path.
    x = jax.random.normal(kx, (batch, seq, hidden), dtype=jnp.float32).astype(
        jnp.bfloat16)
    # Module __init__ uses zeros(dim); use a small random weight so the
    # (1 + weight) path is actually exercised.
    weight = 0.1 * jax.random.normal(kw, (hidden,), dtype=jnp.float32)

    out = jax.block_until_ready(gemma_rmsnorm(x, weight, eps=1e-6))
    ref = _reference(x, weight, eps=1e-6)
    assert out.shape == x.shape and out.dtype == x.dtype
    assert jnp.allclose(out.astype(jnp.float32), ref.astype(jnp.float32),
                        atol=1e-2, rtol=1e-2)

    # Ragged row count (21 rows, tile 16): exercises the masked boundary block
    # that replaced the wrapper-side pad/slice.
    x_rag = jax.random.normal(kx, (3, 7, hidden), dtype=jnp.float32).astype(
        jnp.bfloat16)
    out_rag = jax.block_until_ready(gemma_rmsnorm(x_rag, weight, eps=1e-6))
    ref_rag = _reference(x_rag, weight, eps=1e-6)
    assert jnp.allclose(out_rag.astype(jnp.float32),
                        ref_rag.astype(jnp.float32), atol=1e-2, rtol=1e-2)

    print("KERNEL_OK")
</pallas_src>

<mosaic_0001>
module attributes {stable_mosaic.version = 11 : i64} {
  func.func @_rmsnorm_kernel(%arg0: i32, %arg1: memref<16x256xbf16, #tpu.memory_space<vmem>>, %arg2: memref<1x256xf32, #tpu.memory_space<vmem>>, %arg3: memref<16x256xbf16, #tpu.memory_space<vmem>>) attributes {dimension_semantics = [#tpu.dimension_semantics<parallel>], iteration_bounds = array<i64: 1>, scalar_prefetch = 0 : i64, scratch_operands = 0 : i64, tpu.core_type = #tpu.core_type<tc>, window_params = [{transform_indices = @transform_0, window_bounds = array<i64: 16, 256>}, {pipeline_mode = #tpu.pipeline_mode<synchronous>, transform_indices = @transform_1, window_bounds = array<i64: 1, 256>}, {transform_indices = @transform_2, window_bounds = array<i64: 16, 256>}]} {
    %c0 = arith.constant 0 : index
    %c0_0 = arith.constant 0 : index
    %0 = vector.load %arg2[%c0, %c0_0] : memref<1x256xf32, #tpu.memory_space<vmem>>, vector<1x256xf32>
    %cst = arith.constant 1.000000e+00 : f32
    %1 = vector.broadcast %cst : f32 to vector<1x256xf32>
    %2 = arith.addf %1, %0 : vector<1x256xf32>
    %c0_i32 = arith.constant 0 : i32
    %c1_i32 = arith.constant 1 : i32
    %3 = arith.muli %c0_i32, %c1_i32 : i32
    %c0_i32_1 = arith.constant 0 : i32
    %4 = arith.addi %c0_i32_1, %3 : i32
    %c16_i32 = arith.constant 16 : i32
    %5 = arith.muli %4, %c16_i32 : i32
    %6 = tpu.assume_multiple %5, 16 : i32
    %7 = arith.index_cast %6 : i32 to index
    %c0_2 = arith.constant 0 : index
    %8 = vector.load %arg1[%7, %c0_2] : memref<16x256xbf16, #tpu.memory_space<vmem>>, vector<16x256xbf16>
    %9 = arith.extf %8 : vector<16x256xbf16> to vector<16x256xf32>
    %10 = arith.mulf %9, %9 : vector<16x256xf32>
    %cst_3 = arith.constant dense<0.000000e+00> : vector<16xf32>
    %11 = vector.multi_reduction <add>, %10, %cst_3 [1] : vector<16x256xf32> to vector<16xf32>
    %12 = vector.shape_cast %11 : vector<16xf32> to vector<16x1xf32>
    %cst_4 = arith.constant 3.906250e-03 : f32
    %13 = vector.broadcast %cst_4 : f32 to vector<16x1xf32>
    %14 = arith.mulf %12, %13 : vector<16x1xf32>
    %cst_5 = arith.constant 9.99999997E-7 : f32
    %15 = vector.broadcast %cst_5 : f32 to vector<16x1xf32>
    %16 = arith.addf %14, %15 : vector<16x1xf32>
    %17 = math.rsqrt %16 : vector<16x1xf32>
    %18 = vector.broadcast %17 : vector<16x1xf32> to vector<16x256xf32>
    %19 = arith.mulf %9, %18 : vector<16x256xf32>
    %20 = vector.broadcast %2 : vector<1x256xf32> to vector<16x256xf32>
    %21 = arith.mulf %19, %20 : vector<16x256xf32>
    %22 = arith.truncf %21 : vector<16x256xf32> to vector<16x256xbf16>
    %23 = arith.index_cast %6 : i32 to index
    %c0_6 = arith.constant 0 : index
    %24 = vector.load %arg3[%23, %c0_6] : memref<16x256xbf16, #tpu.memory_space<vmem>>, vector<16x256xbf16>
    tpu.vector_store %arg3[%23, %c0_6], %22 {strides = array<i32>} : memref<16x256xbf16, #tpu.memory_space<vmem>>, vector<16x256xbf16>,
    %c1_i32_7 = arith.constant 1 : i32
    return
  }
  func.func @transform_0(%arg0: i32) -> (i32, i32) {
    %c0_i32 = arith.constant 0 : i32
    %c0_i32_0 = arith.constant 0 : i32
    return %arg0, %c0_i32 : i32, i32
  }
  func.func @transform_1(%arg0: i32) -> (i32, i32) {
    %c0_i32 = arith.constant 0 : i32
    %c0_i32_0 = arith.constant 0 : i32
    %c0_i32_1 = arith.constant 0 : i32
    return %c0_i32, %c0_i32_0 : i32, i32
  }
  func.func @transform_2(%arg0: i32) -> (i32, i32) {
    %c0_i32 = arith.constant 0 : i32
    %c0_i32_0 = arith.constant 0 : i32
    return %arg0, %c0_i32 : i32, i32
  }
}

</mosaic_0001>

<llo_original>
// kernel: tpu_custom_call.1
$region0: #{tpu_custom_call.1}
  #allocation0 [shape = 'u32[]', space=smem, size = 0x4, offset = 0x4, fixed_abs, tag = 'smem constant byte address 0x4 - core index']
  #allocation1 [shape = 'u32[72,128]{1,0:T(1,128)}', space=vmem, size = 0x9000, scoped, tag = 'internal scratch']
  %s0 = inlined_call_operand.hbm [shape: bf16[16,256], index: 0, kind: input, shape index: {}]
  %s1 = inlined_call_operand.hbm [shape: f32[1,256], index: 1, kind: input, shape index: {}]
  %s2 = inlined_call_operand.hbm [shape: bf16[16,256], index: 2, kind: output, shape index: {}]
  %s3 = sld [smem:[#allocation0]]
  $region26: #{tpu_custom_call.1} parent=0
    _
  %s5 = ssub.s32 1, %s3
  %s6 = scalar_select 0, %s5, %s3
  $region1: #{tpu_custom_call.1} parent=0
    #allocation2 [shape = 'u8[8192]{0}', space=vmem, size = 0x2000, scoped, tag = 'input window, operand 0, single buffered']
    #allocation3 [shape = 's32[1]{0}', space=sflag, size = 0x4, scoped, tag = 'scoped memory for tpu_custom_call.1']
    #allocation4 [shape = 's32[1]{0}', space=sflag, size = 0x4, scoped, tag = 'scoped memory for tpu_custom_call.1']
    #allocation5 [shape = 'u8[1024]{0}', space=vmem, size = 0x400, scoped, tag = 'input window, operand 1, single buffered']
    #allocation6 [shape = 's32[1]{0}', space=sflag, size = 0x4, scoped, tag = 'scoped memory for tpu_custom_call.1']
    #allocation7 [shape = 'u8[8192]{0}', space=vmem, size = 0x2000, scoped, tag = 'output window, operand 0, single buffered']
    %7 = vsyncpa [#allocation3], 0
    %8 = vsyncpa [#allocation6], 0
    %9 = vsyncpa [#allocation4], 0
    // Predicated region
    $region2: #{tpu_custom_call.1} parent=1 // pred_check
      _
    $region3: #{tpu_custom_call.1} parent=1 // pred_check_branch
      %11 = sbr.rel (0) target = $region5
    $region4: #{tpu_custom_call.1} parent=1 // pred_region
      %13 = vsyncadd [#allocation3], 0
      %s14 = sshll.u32 %s0, 4
      %s15 = int_to_ptr.hbm [resolvable:$true] %s14
      %s16 = sshll.u32 [#allocation2], 4
      %s17 = int_to_ptr.vmem [resolvable:$true] %s16
      %22 = dma.hbm_to_vmem [thread:$0]  %s15, 256, %s17, [#allocation3], 128, 128, 8
    $region5: #{tpu_custom_call.1} parent=1 // pred_fallthru
      _
    // Predicated region
    $region6: #{tpu_custom_call.1} parent=1 // pred_check
      _
    $region7: #{tpu_custom_call.1} parent=1 // pred_check_branch
      %24 = sbr.rel (0) target = $region9
    $region8: #{tpu_custom_call.1} parent=1 // pred_region
      %26 = vsyncadd [#allocation6], 0
      %s28 = sshll.u32 %s1, 4
      %s29 = int_to_ptr.hbm [resolvable:$true] %s28
      %s30 = sshll.u32 [#allocation5], 4
      %s31 = int_to_ptr.vmem [resolvable:$true] %s30
      %33 = dma.hbm_to_vmem [thread:$0]  %s29, 32, %s31, [#allocation6]
    $region9: #{tpu_custom_call.1} parent=1 // pred_fallthru
      _
    // Predicated region
    $region10: #{tpu_custom_call.1} parent=1 // pred_check
      _
    $region11: #{tpu_custom_call.1} parent=1 // pred_check_branch
      %35 = sbr.rel (0) target = $region13
    $region12: #{tpu_custom_call.1} parent=1 // pred_region
      %37 = dma.done [#allocation3], 256
    $region13: #{tpu_custom_call.1} parent=1 // pred_fallthru
      _
    // Predicated region
    $region14: #{tpu_custom_call.1} parent=1 // pred_check
      _
    $region15: #{tpu_custom_call.1} parent=1 // pred_check_branch
      %39 = sbr.rel (0) target = $region17
    $region16: #{tpu_custom_call.1} parent=1 // pred_region
      %41 = dma.done [#allocation6], 32
    $region17: #{tpu_custom_call.1} parent=1 // pred_fallthru
      _
    %v42 = vld [vmem:[#allocation5] sm:$0x3]
    %v43 = vadd.f32 %v42, 1.0
    %s44 = smul.u32 0, 2
    %s45 = smul.addr %s44, 4
    %s46 = scalar_lea.vmem [#allocation2], %s45
    %v47 = vld [vmem:[%s46] sm:$0xff]
    %v48 = vld [vmem:[%s46 + $0x8] sm:$0xff]
    %v49 = vunpack.c.l.bf16 %v47
    %v50 = vunpack.c.h.bf16 %v47
    %v51 = vunpack.c.l.bf16 %v48
    %v52 = vunpack.c.h.bf16 %v48
    %v53 = vmul.f32 %v49, %v49
    %v54 = vmul.f32 %v50, %v50
    %v55 = vmul.f32 %v51, %v51
    %v56 = vmul.f32 %v52, %v52
    %v57 = vadd.f32 %v53, %v54
    %58 = vadd.xlane.f32.xlu0 %v57
    %v59 = vpop.xlane.xlu0 %58
    %v60 = vadd.f32 %v55, %v56
    %61 = vadd.xlane.f32.xlu0 %v60
    %v62 = vpop.xlane.xlu0 %61
    %v63 = vmul.f32 %v59, 0.00390625
    %v64 = vmul.f32 %v62, 0.00390625
    %v65 = vadd.f32 %v63, 1e-06
    %v66 = vadd.f32 %v64, 1e-06
    %v67 = vrsqrt.pop %v65
    %v68 = vmul.f32 %v67, %v65
    %v69 = vmul.f32 %v68, %v67
    %v70 = vmul.f32 0.5, %v69
    %v71 = vsub.f32 1.5, %v70
    %v72 = vmul.f32 %v67, %v71
    %vm73 = vweird.f32 %v65
    %vm74 = vweird.f32 %v67
    %vm75 = vmor %vm73, %vm74
    %v76 = vsel %vm75, %v67, %v72
    %v77 = vrsqrt.pop %v66
    %v78 = vmul.f32 %v77, %v66
    %v79 = vmul.f32 %v78, %v77
    %v80 = vmul.f32 0.5, %v79
    %v81 = vsub.f32 1.5, %v80
    %v82 = vmul.f32 %v77, %v81
    %vm83 = vweird.f32 %v66
    %vm84 = vweird.f32 %v77
    %vm85 = vmor %vm83, %vm84
    %v86 = vsel %vm85, %v77, %v82
    %v87 = vmul.f32 %v49, %v76
    %v88 = vmul.f32 %v50, %v76
    %v89 = vmul.f32 %v51, %v86
    %v90 = vmul.f32 %v52, %v86
    %v92 = vperm.slane %v43, 0
    %v93 = vperm.slane %v43, 1
    %v96 = vmul.f32 %v87, %v92
    %v97 = vmul.f32 %v88, %v93
    %v98 = vmul.f32 %v89, %v92
    %v99 = vmul.f32 %v90, %v93
    %v100 = vpack.c.bf16 %v97, %v96
    %v101 = vpack.c.bf16 %v99, %v98
    %s102 = smul.addr %s44, 4
    %s103 = scalar_lea.vmem [#allocation7], %s102
    %104 = vst [vmem:[%s103] sm:$0xff] %v100
    %105 = vst [vmem:[%s103 + $0x8] sm:$0xff] %v101
    // Predicated region
    $region18: #{tpu_custom_call.1} parent=1 // pred_check
      _
    $region19: #{tpu_custom_call.1} parent=1 // pred_check_branch
      %107 = sbr.rel (0) target = $region21
    $region20: #{tpu_custom_call.1} parent=1 // pred_region
      %109 = vsyncadd [#allocation4], 0
      %s110 = sshll.u32 [#allocation7], 4
      %s111 = int_to_ptr.vmem [resolvable:$true] %s110
      %s112 = sshll.u32 %s2, 4
      %s113 = int_to_ptr.hbm [resolvable:$true] %s112
      %118 = dma.vmem_to_hbm [thread:$0]  %s111, 256, %s113, [#allocation4], 128, 128, 8
    $region21: #{tpu_custom_call.1} parent=1 // pred_fallthru
      _
    // Predicated region
    $region22: #{tpu_custom_call.1} parent=1 // pred_check
      _
    $region23: #{tpu_custom_call.1} parent=1 // pred_check_branch
      %120 = sbr.rel (0) target = $region25
    $region24: #{tpu_custom_call.1} parent=1 // pred_region
      %122 = dma.done [#allocation4], 256
    $region25: #{tpu_custom_call.1} parent=1 // pred_fallthru
      _
    %123 = vsyncpa [#allocation3], 1
    %124 = vsyncpa [#allocation6], 1
    %125 = vsyncpa [#allocation4], 1

</llo_original>
